<compile_context>
chip_gen: v7x
topology: tpu7x:2x2x1
jax: 0.10.0
libtpu: 0.0.40
codegen_flags: <defaults>
</compile_context>

<pallas_src>
import jax
import jax.numpy as jnp
from jax.experimental import pallas as pl
from jax.experimental.pallas import tpu as pltpu


def tms_forward_kernel(x_ref, m_ref, b_ref, o_ref):
    # x_ref: (TB, F)   m_ref: (F, F) = W_i^T @ W_i   b_ref: (1, F)   o_ref: (TB, F)
    out = jnp.dot(x_ref[...], m_ref[...], preferred_element_type=jnp.float32)
    out = out + b_ref[...]                       # (1, F) broadcast, once per tile
    o_ref[...] = jnp.maximum(out, 0.0).astype(o_ref.dtype)


def _pick_batch_block(batch):
    # Largest lane/sublane-friendly tile (multiple of 8) that evenly divides
    # the batch; for tiny batches just take the whole batch (full-dim blocks
    # are exempt from the (8, 128) divisibility rule).
    for tb in (1024, 512, 256, 128, 64, 32, 16, 8):
        if tb <= batch and batch % tb == 0:
            return tb
    return batch


def tms_forward(features_bif, W, b_final, *, batch_block=None):
    """features_bif: (batch, n_instances, n_features) -> same-shape output."""
    B, I, F = features_bif.shape
    H = W.shape[1]
    assert W.shape == (I, H, F)
    assert b_final.shape == (I, F)

    if batch_block is None:
        batch_block = _pick_batch_block(B)
    assert B % batch_block == 0, "batch must be divisible by batch_block"
    grid = (I, B // batch_block)

    # One-time weight folding + tiny layout plumbing (outside the hot loop).
    M = jnp.einsum("ihf,ihg->ifg", W, W)              # (I, F, F) == W_i^T @ W_i
    x_ibf = jnp.transpose(features_bif, (1, 0, 2))    # (I, B, F) instance-major
    b_i1f = b_final.reshape(I, 1, F)                  # (I, 1, F)

    out_ibf = pl.pallas_call(
        tms_forward_kernel,
        out_shape=jax.ShapeDtypeStruct((I, B, F), features_bif.dtype),
        grid=grid,
        in_specs=[
            # x: dense (TB, F) tile per (instance, batch-block)
            pl.BlockSpec((pl.Squeezed(), batch_block, F), lambda i, b: (i, b, 0)),
            # M_i: resident across the inner batch axis
            pl.BlockSpec((pl.Squeezed(), F, F), lambda i, b: (i, 0, 0)),
            # bias row: resident across the inner batch axis
            pl.BlockSpec((pl.Squeezed(), 1, F), lambda i, b: (i, 0, 0)),
        ],
        out_specs=pl.BlockSpec(
            (pl.Squeezed(), batch_block, F), lambda i, b: (i, b, 0)
        ),
        compiler_params=pltpu.CompilerParams(
            dimension_semantics=("parallel", "parallel")
        ),
    )(x_ibf, M, b_i1f)

    return jnp.transpose(out_ibf, (1, 0, 2))          # back to (B, I, F)


def tms_forward_ref(features_bif, W, b_final):
    hidden = jnp.einsum("bif,ihf->bih", features_bif, W)
    out = jnp.einsum("bih,ihf->bif", hidden, W)
    return jax.nn.relu(out + b_final[None, :, :])


if __name__ == "__main__":
    # Shapes consistent with the module: n_features=80, n_hidden=20; small batch/instances.
    n_instances, n_hidden, n_features, batch = 4, 20, 80, 8

    key = jax.random.PRNGKey(0)
    k_w, k_x = jax.random.split(key)

    # Deterministic xavier-normal-style init for W (gain=1).
    fan_in, fan_out = n_hidden * n_features, n_instances * n_features
    std = (2.0 / (fan_in + fan_out)) ** 0.5
    W = std * jax.random.normal(
        k_w, (n_instances, n_hidden, n_features), dtype=jnp.float32
    )
    b_final = jnp.zeros((n_instances, n_features), dtype=jnp.float32)

    # Deterministic synthetic batch in [0, 1) (like generate_batch's uniform data).
    features = jax.random.uniform(
        k_x, (batch, n_instances, n_features), dtype=jnp.float32
    )

    out = tms_forward(features, W, b_final)
    out = jax.block_until_ready(out)

    ref = tms_forward_ref(features, W, b_final)
    assert out.shape == (batch, n_instances, n_features)
    assert jnp.allclose(out, ref, atol=1e-5, rtol=1e-5)

    print("KERNEL_OK")
</pallas_src>

<mosaic_0001>
module attributes {stable_mosaic.version = 11 : i64} {
  func.func @tms_forward_kernel(%arg0: i32, %arg1: i32, %arg2: memref<1x8x80xf32, #tpu.memory_space<vmem>>, %arg3: memref<1x80x80xf32, #tpu.memory_space<vmem>>, %arg4: memref<1x1x80xf32, #tpu.memory_space<vmem>>, %arg5: memref<1x8x80xf32, #tpu.memory_space<vmem>>) attributes {dimension_semantics = [#tpu.dimension_semantics<parallel>, #tpu.dimension_semantics<parallel>], iteration_bounds = array<i64: 4, 1>, scalar_prefetch = 0 : i64, scratch_operands = 0 : i64, tpu.core_type = #tpu.core_type<tc>, window_params = [{transform_indices = @transform_0, window_bounds = array<i64: 1, 8, 80>}, {transform_indices = @transform_1, window_bounds = array<i64: 1, 80, 80>}, {transform_indices = @transform_2, window_bounds = array<i64: 1, 1, 80>}, {transform_indices = @transform_3, window_bounds = array<i64: 1, 8, 80>}]} {
    %c0 = arith.constant 0 : index
    %c0_0 = arith.constant 0 : index
    %c0_1 = arith.constant 0 : index
    %0 = vector.load %arg2[%c0, %c0_0, %c0_1] : memref<1x8x80xf32, #tpu.memory_space<vmem>>, vector<1x8x80xf32>
    %1 = vector.shape_cast %0 : vector<1x8x80xf32> to vector<8x80xf32>
    %c0_2 = arith.constant 0 : index
    %c0_3 = arith.constant 0 : index
    %c0_4 = arith.constant 0 : index
    %2 = vector.load %arg3[%c0_2, %c0_3, %c0_4] : memref<1x80x80xf32, #tpu.memory_space<vmem>>, vector<1x80x80xf32>
    %3 = vector.shape_cast %2 : vector<1x80x80xf32> to vector<80x80xf32>
    %cst = arith.constant dense<0.000000e+00> : vector<8x80xf32>
    %4 = tpu.matmul %1, %3, %cst {dimension_numbers = #tpu.dot_dimension_numbers<[1], [0], [0], [1], [0, 0, 1, 1], [], []>} : vector<8x80xf32>, vector<80x80xf32>, vector<8x80xf32> -> vector<8x80xf32>
    %c0_5 = arith.constant 0 : index
    %c0_6 = arith.constant 0 : index
    %c0_7 = arith.constant 0 : index
    %5 = vector.load %arg4[%c0_5, %c0_6, %c0_7] : memref<1x1x80xf32, #tpu.memory_space<vmem>>, vector<1x1x80xf32>
    %6 = vector.shape_cast %5 : vector<1x1x80xf32> to vector<1x80xf32>
    %7 = vector.broadcast %6 : vector<1x80xf32> to vector<8x80xf32>
    %8 = arith.addf %4, %7 : vector<8x80xf32>
    %cst_8 = arith.constant 0.000000e+00 : f32
    %9 = vector.broadcast %cst_8 : f32 to vector<8x80xf32>
    %10 = arith.maximumf %8, %9 : vector<8x80xf32>
    %c0_9 = arith.constant 0 : index
    %c0_10 = arith.constant 0 : index
    %c0_11 = arith.constant 0 : index
    %11 = vector.load %arg5[%c0_9, %c0_10, %c0_11] : memref<1x8x80xf32, #tpu.memory_space<vmem>>, vector<1x8x80xf32>
    %12 = vector.shape_cast %11 : vector<1x8x80xf32> to vector<8x80xf32>
    %13 = vector.shape_cast %10 : vector<8x80xf32> to vector<1x8x80xf32>
    tpu.vector_store %arg5[%c0_9, %c0_10, %c0_11], %13 {strides = array<i32>} : memref<1x8x80xf32, #tpu.memory_space<vmem>>, vector<1x8x80xf32>,
    return
  }
  func.func @transform_0(%arg0: i32, %arg1: i32) -> (i32, i32, i32) {
    %c0_i32 = arith.constant 0 : i32
    %c0_i32_0 = arith.constant 0 : i32
    return %arg0, %arg1, %c0_i32 : i32, i32, i32
  }
  func.func @transform_1(%arg0: i32, %arg1: i32) -> (i32, i32, i32) {
    %c0_i32 = arith.constant 0 : i32
    %c0_i32_0 = arith.constant 0 : i32
    %c0_i32_1 = arith.constant 0 : i32
    return %arg0, %c0_i32, %c0_i32_0 : i32, i32, i32
  }
  func.func @transform_2(%arg0: i32, %arg1: i32) -> (i32, i32, i32) {
    %c0_i32 = arith.constant 0 : i32
    %c0_i32_0 = arith.constant 0 : i32
    %c0_i32_1 = arith.constant 0 : i32
    return %arg0, %c0_i32, %c0_i32_0 : i32, i32, i32
  }
  func.func @transform_3(%arg0: i32, %arg1: i32) -> (i32, i32, i32) {
    %c0_i32 = arith.constant 0 : i32
    %c0_i32_0 = arith.constant 0 : i32
    return %arg0, %arg1, %c0_i32 : i32, i32, i32
  }
}

</mosaic_0001>

<llo_original>
// kernel: tpu_custom_call.1
$region0: #{tpu_custom_call.1}
  #allocation0 [shape = 'u32[]', space=smem, size = 0x4, offset = 0x4, fixed_abs, tag = 'smem constant byte address 0x4 - core index']
  #allocation1 [shape = 'u32[144,128]{1,0:T(1,128)}', space=vmem, size = 0x12000, scoped, tag = 'internal scratch']
  %s0 = inlined_call_operand.hbm [shape: f32[4,8,80], index: 0, kind: input, shape index: {}]
  %s1 = inlined_call_operand.hbm [shape: f32[4,80,80], index: 1, kind: input, shape index: {}]
  %s2 = inlined_call_operand.vmem [shape: f32[4,1,80], index: 2, kind: input, shape index: {}]
  %s3 = inlined_call_operand.hbm [shape: f32[4,8,80], index: 3, kind: output, shape index: {}]
  %s4 = sld [smem:[#allocation0]]
  $region53: #{tpu_custom_call.1} parent=0
    _
  %s6 = ssub.s32 1, %s4
  %s7 = scalar_select 0, %s6, %s4
  $region1: #{tpu_custom_call.1} parent=0
    #allocation2 [shape = 'u8[8192]{0}', space=vmem, size = 0x2000, scoped, tag = 'input window, operand 0']
    #allocation3 [shape = 's32[2]{0}', space=sflag, size = 0x8, scoped, tag = 'scoped memory for tpu_custom_call.1']
    #allocation4 [shape = 's32[2]{0}', space=sflag, size = 0x8, scoped, tag = 'scoped memory for tpu_custom_call.1']
    #allocation5 [shape = 'u8[81920]{0}', space=vmem, size = 0x14000, scoped, tag = 'input window, operand 1']
    #allocation6 [shape = 's32[2]{0}', space=sflag, size = 0x8, scoped, tag = 'scoped memory for tpu_custom_call.1']
    #allocation7 [shape = 'u8[8192]{0}', space=vmem, size = 0x2000, scoped, tag = 'output window, operand 0']
    %8 = vsyncpa [#allocation3], 0
    %s9 = scalar_lea.sflag [#allocation3], 1
    %10 = vsyncpa %s9, 0
    %11 = vsyncpa [#allocation6], 0
    %s12 = scalar_lea.sflag [#allocation6], 1
    %13 = vsyncpa %s12, 0
    %14 = vsyncpa [#allocation4], 0
    %s15 = scalar_lea.sflag [#allocation4], 1
    %16 = vsyncpa %s15, 0
    loop: start=0, step=1, limit=6
    $region2: #{tpu_custom_call.1} parent=1 // loop_pre_header
      _
    $region3: #{tpu_custom_call.1} parent=1 // loop_header
      %s18 = sphi 0, %s22
      %p19 = scmp.ge.s32.totalorder %s18, 6
      %s25 = sphi 0, %s37
      %s26 = sphi 0, %s33
      %s27 = sphi 0, %s25
      %s28 = sphi 0, %s26
      %s29 = sphi 0, %s27
      %s30 = sphi 0, %s28
      %s42 = sphi 0, %s44
      %s45 = sphi 0, %s42
      %s46 = sphi 0, %s45
      %s62 = sphi 0, %s46
      %s68 = sphi 0, %s70
      %s71 = sphi 0, %s68
      %s72 = sphi 0, %s71
      %s88 = sphi 0, %s72
      %s94 = sphi 0, %s96
      %s97 = sphi 0, %s94
      %s98 = sphi 0, %s97
      %s114 = sphi 0, %s98
      %s122 = sphi 0, %s124
      %s125 = sphi 0, %s122
      %s126 = sphi 0, %s125
      %s142 = sphi 0, %s126
    $region4: #{tpu_custom_call.1} parent=1 // loop_header_branch
      %21 = sbr.rel (%p19) target = $region8
    $region5: #{tpu_custom_call.1} parent=1 // loop_body
      %s23 = ssub.s32 %s18, 1
      %s24 = ssub.s32 %s18, 2
      %s31 = sadd.s32 1, %s26
      %p32 = scmp.ge.s32.totalorder %s31, 1
      %s33 = scalar_select %p32, 0, %s31
      %s34 = sadd.s32 1, %s25
      %s35 = scalar_select %p32, %s34, %s25
      %p36 = scmp.ge.s32.totalorder %s35, 4
      %s37 = scalar_select %p36, 0, %s35
      %s38 = ssub.s32 %s25, %s37
      %s39 = ssub.s32 %s26, %s33
      %s40 = sor.u32 %s38, %s39
      %p41 = scmp.eq.s32.totalorder %s40, 0
      %s43 = sadd.s32 %s42, 1
      %s44 = scalar_select %p41, %s42, %s43
      %p47 = pneg %p41
      %p48 = scmp.eq.s32.totalorder %s18, 3
      %p49 = por %p47, %p48
      %p50 = scmp.ne.s32.totalorder %s42, %s45
      %p51 = scmp.eq.s32.totalorder %s18, 0
      %p52 = por %p50, %p51
      %p53 = scmp.ne.s32.totalorder %s42, %s45
      %p54 = scmp.eq.s32.totalorder %s23, 3
      %p55 = por %p53, %p54
      %p56 = scmp.ne.s32.totalorder %s45, %s46
      %p57 = scmp.eq.s32.totalorder %s23, 0
      %p58 = por %p56, %p57
      %p59 = scmp.ne.s32.totalorder %s45, %s46
      %p60 = scmp.eq.s32.totalorder %s24, 3
      %p61 = por %p59, %p60
      %p63 = scmp.ne.s32.totalorder %s46, %s62
      %p64 = scmp.eq.s32.totalorder %s24, 0
      %p65 = por %p63, %p64
      %s66 = ssub.s32 %s25, %s37
      %p67 = scmp.eq.s32.totalorder %s66, 0
      %s69 = sadd.s32 %s68, 1
      %s70 = scalar_select %p67, %s68, %s69
      %p73 = pneg %p67
      %p74 = scmp.eq.s32.totalorder %s18, 3
      %p75 = por %p73, %p74
      %p76 = scmp.ne.s32.totalorder %s68, %s71
      %p77 = scmp.eq.s32.totalorder %s18, 0
      %p78 = por %p76, %p77
      %p79 = scmp.ne.s32.totalorder %s68, %s71
      %p80 = scmp.eq.s32.totalorder %s23, 3
      %p81 = por %p79, %p80
      %p82 = scmp.ne.s32.totalorder %s71, %s72
      %p83 = scmp.eq.s32.totalorder %s23, 0
      %p84 = por %p82, %p83
      %p85 = scmp.ne.s32.totalorder %s71, %s72
      %p86 = scmp.eq.s32.totalorder %s24, 3
      %p87 = por %p85, %p86
      %p89 = scmp.ne.s32.totalorder %s72, %s88
      %p90 = scmp.eq.s32.totalorder %s24, 0
      %p91 = por %p89, %p90
      %s92 = ssub.s32 %s25, %s37
      %p93 = scmp.eq.s32.totalorder %s92, 0
      %s95 = sadd.s32 %s94, 1
      %s96 = scalar_select %p93, %s94, %s95
      %p99 = pneg %p93
      %p100 = scmp.eq.s32.totalorder %s18, 3
      %p101 = por %p99, %p100
      %p102 = scmp.ne.s32.totalorder %s94, %s97
      %p103 = scmp.eq.s32.totalorder %s18, 0
      %p104 = por %p102, %p103
      %p105 = scmp.ne.s32.totalorder %s94, %s97
      %p106 = scmp.eq.s32.totalorder %s23, 3
      %p107 = por %p105, %p106
      %p108 = scmp.ne.s32.totalorder %s97, %s98
      %p109 = scmp.eq.s32.totalorder %s23, 0
      %p110 = por %p108, %p109
      %p111 = scmp.ne.s32.totalorder %s97, %s98
      %p112 = scmp.eq.s32.totalorder %s24, 3
      %p113 = por %p111, %p112
      %p115 = scmp.ne.s32.totalorder %s98, %s114
      %p116 = scmp.eq.s32.totalorder %s24, 0
      %p117 = por %p115, %p116
      %s118 = ssub.s32 %s25, %s37
      %s119 = ssub.s32 %s26, %s33
      %s120 = sor.u32 %s118, %s119
      %p121 = scmp.eq.s32.totalorder %s120, 0
      %s123 = sadd.s32 %s122, 1
      %s124 = scalar_select %p121, %s122, %s123
      %p127 = pneg %p121
      %p128 = scmp.eq.s32.totalorder %s18, 3
      %p129 = por %p127, %p128
      %p130 = scmp.ne.s32.totalorder %s122, %s125
      %p131 = scmp.eq.s32.totalorder %s18, 0
      %p132 = por %p130, %p131
      %p133 = scmp.ne.s32.totalorder %s122, %s125
      %p134 = scmp.eq.s32.totalorder %s23, 3
      %p135 = por %p133, %p134
      %p136 = scmp.ne.s32.totalorder %s125, %s126
      %p137 = scmp.eq.s32.totalorder %s23, 0
      %p138 = por %p136, %p137
      %p139 = scmp.ne.s32.totalorder %s125, %s126
      %p140 = scmp.eq.s32.totalorder %s24, 3
      %p141 = por %p139, %p140
      %p143 = scmp.ne.s32.totalorder %s126, %s142
      %p144 = scmp.eq.s32.totalorder %s24, 0
      %p145 = por %p143, %p144
      %p146 = scmp.le.s32.totalorder 1, %s18
      %p147 = scmp.lt.s32.totalorder %s18, 5
      %p148 = pnand %p146, %p147
      %p149 = pneg %p148
      // Predicated region
      $region9: #{tpu_custom_call.1} parent=5 // pred_check
        _
      $region10: #{tpu_custom_call.1} parent=5 // pred_check_branch
        %151 = sbr.rel (%p148) target = $region12
      $region11: #{tpu_custom_call.1} parent=5 // pred_region
        %s152 = ssub.s32 %s18, 1
      $region12: #{tpu_custom_call.1} parent=5 // pred_fallthru
        _
      %p153 = scmp.lt.s32.totalorder %s18, 4
      // Predicated region
      $region13: #{tpu_custom_call.1} parent=5 // pred_check
        %p154 = pneg %p153
      $region14: #{tpu_custom_call.1} parent=5 // pred_check_branch
        %156 = sbr.rel (%p154) target = $region16
      $region15: #{tpu_custom_call.1} parent=5 // pred_region
        // Predicated region
        $region17: #{tpu_custom_call.1} parent=15 // pred_check
          %p157 = pneg %p52
        $region18: #{tpu_custom_call.1} parent=15 // pred_check_branch
          %159 = sbr.rel (%p157) target = $region20
        $region19: #{tpu_custom_call.1} parent=15 // pred_region
          %s160 = sand.u32 %s42, 1
          %s161 = scalar_lea.sflag [#allocation3], %s160
          %s162 = sand.u32 %s42, 1
          %s163 = smul.addr %s162, 8
          %s164 = scalar_lea.vmem [#allocation2], %s163
          %s166 = ssub.s32 128, 128
          %167 = vsyncadd %s161, %s166
          %s168 = sadd.s32 %s26, %s25
          %s169 = smul.addr %s168, 128
          %s170 = scalar_lea.hbm %s0, %s169
          %s172 = sshll.u32 %s164, 4
          %s173 = int_to_ptr.vmem [resolvable:$true] %s172
          %175 = dma.hbm_to_vmem [thread:$0]  %s170, 128, %s173, %s161
        $region20: #{tpu_custom_call.1} parent=15 // pred_fallthru
          _
        // Predicated region
        $region21: #{tpu_custom_call.1} parent=15 // pred_check
          %p176 = pneg %p78
        $region22: #{tpu_custom_call.1} parent=15 // pred_check_branch
          %178 = sbr.rel (%p176) target = $region24
        $region23: #{tpu_custom_call.1} parent=15 // pred_region
          %s179 = sand.u32 %s68, 1
          %s180 = scalar_lea.sflag [#allocation6], %s179
          %s181 = sand.u32 %s68, 1
          %s182 = smul.addr %s181, 80
          %s183 = scalar_lea.vmem [#allocation5], %s182
          %s185 = ssub.s32 1280, 1280
          %186 = vsyncadd %s180, %s185
          %s187 = smul.addr %s25, 10
          %s188 = smul.addr %s187, 128
          %s189 = scalar_lea.hbm %s1, %s188
          %s190 = sshll.u32 %s183, 4
          %s191 = int_to_ptr.vmem [resolvable:$true] %s190
          %196 = dma.hbm_to_vmem [thread:$0]  %s189, 1280, %s191, %s180, 128, 128, 8
        $region24: #{tpu_custom_call.1} parent=15 // pred_fallthru
          _
        // Predicated region
        $region25: #{tpu_custom_call.1} parent=15 // pred_check
          %p197 = pneg %p104
        $region26: #{tpu_custom_call.1} parent=15 // pred_check_branch
          %199 = sbr.rel (%p197) target = $region28
        $region27: #{tpu_custom_call.1} parent=15 // pred_region
          %p200 = scmp.lt.s32.totalorder %s25, 3
          %s201 = scalar_select %p200, %s25, 3
          %s202 = scalar_lea.vmem %s2, %s201
        $region28: #{tpu_custom_call.1} parent=15 // pred_fallthru
          _
      $region16: #{tpu_custom_call.1} parent=5 // pred_fallthru
        _
      %p203 = scmp.le.s32.totalorder 1, %s18
      %p204 = scmp.lt.s32.totalorder %s18, 5
      %p205 = pnand %p203, %p204
      %p206 = pneg %p205
      // Predicated region
      $region29: #{tpu_custom_call.1} parent=5 // pred_check
        _
      $region30: #{tpu_custom_call.1} parent=5 // pred_check_branch
        %208 = sbr.rel (%p205) target = $region32
      $region31: #{tpu_custom_call.1} parent=5 // pred_region
        %s209 = ssub.s32 %s18, 1
        %s210 = sand.u32 %s45, 1
        %s211 = scalar_lea.sflag [#allocation3], %s210
        %s212 = sand.u32 %s45, 1
        %s213 = smul.addr %s212, 8
        %s214 = scalar_lea.vmem [#allocation2], %s213
        // Predicated region
        $region33: #{tpu_custom_call.1} parent=31 // pred_check
          %p215 = pneg %p58
        $region34: #{tpu_custom_call.1} parent=31 // pred_check_branch
          %217 = sbr.rel (%p215) target = $region36
        $region35: #{tpu_custom_call.1} parent=31 // pred_region
          %218 = dma.done %s211, 128
        $region36: #{tpu_custom_call.1} parent=31 // pred_fallthru
          _
        %s219 = sand.u32 %s71, 1
        %s220 = scalar_lea.sflag [#allocation6], %s219
        %s221 = sand.u32 %s71, 1
        %s222 = smul.addr %s221, 80
        %s223 = scalar_lea.vmem [#allocation5], %s222
        // Predicated region
        $region37: #{tpu_custom_call.1} parent=31 // pred_check
          %p224 = pneg %p84
        $region38: #{tpu_custom_call.1} parent=31 // pred_check_branch
          %226 = sbr.rel (%p224) target = $region40
        $region39: #{tpu_custom_call.1} parent=31 // pred_region
          %227 = dma.done %s220, 1280
        $region40: #{tpu_custom_call.1} parent=31 // pred_fallthru
          _
        %s228 = sand.u32 %s45, 1
        %s229 = scalar_lea.sflag [#allocation3], %s228
        %s230 = sand.u32 %s45, 1
        %s231 = smul.addr %s230, 8
        %s232 = scalar_lea.vmem [#allocation2], %s231
        %p233 = pneg %p58
        %p234 = pneg %p55
        %s235 = sand.u32 %s71, 1
        %s236 = scalar_lea.sflag [#allocation6], %s235
        %s237 = sand.u32 %s71, 1
        %s238 = smul.addr %s237, 80
        %s239 = scalar_lea.vmem [#allocation5], %s238
        %p240 = pneg %p84
        %p241 = pneg %p81
        %p242 = scmp.lt.s32.totalorder %s27, 3
        %s243 = scalar_select %p242, %s27, 3
        %s244 = scalar_lea.vmem %s2, %s243
        %p245 = pneg %p110
        %p246 = pneg %p107
        %p247 = pneg %p138
        %p248 = pneg %p135
        %s249 = sand.u32 %s125, 1
        %s250 = scalar_lea.sflag [#allocation4], %s249
        %s251 = sand.u32 %s125, 1
        %s252 = smul.addr %s251, 8
        %s253 = scalar_lea.vmem [#allocation7], %s252
        %p254 = scmp.lt.s32.totalorder %s27, 3
        %s255 = scalar_select %p254, %s27, 3
        %s256 = scalar_lea.vmem %s2, %s255
        %v257 = vld [vmem:[%s214] sm:$0xff]
        %v258 = vld [vmem:[%s223] sm:$0xff]
        %v259 = vld [vmem:[%s223 + $0x8] sm:$0xff]
        %v260 = vld [vmem:[%s223 + $0x10] sm:$0xff]
        %v261 = vld [vmem:[%s223 + $0x18] sm:$0xff]
        %v262 = vld [vmem:[%s223 + $0x20] sm:$0xff]
        %v263 = vld [vmem:[%s223 + $0x28] sm:$0xff]
        %v264 = vld [vmem:[%s223 + $0x30] sm:$0xff]
        %v265 = vld [vmem:[%s223 + $0x38] sm:$0xff]
        %v266 = vld [vmem:[%s223 + $0x40] sm:$0xff]
        %v267 = vld [vmem:[%s223 + $0x48] sm:$0xff]
        %v268 = vld [vmem:[%s256] sm:$0x1]
        %v270 = vlaneseq
        %v271 = vshrl.u32 %v270, 7
        %v272 = vsub.s32 0, %v271
        %v273 = vrot.slane %v268, %v272
        %vm275 = vcmask 654336
        %v277 = vsel %vm275, %v257, 0
        %279 = vmatprep.subr.mxu0 0.0
        %280 = vmatpush1.msra.mxu0 %v258
        %281 = vmatprep.subr.mxu0 0.0
        %282 = vmatpush1.msra.mxu0 %v259
        %283 = vmatprep.subr.mxu0 0.0
        %284 = vmatpush1.msra.mxu0 %v260
        %285 = vmatprep.subr.mxu0 0.0
        %286 = vmatpush1.msra.mxu0 %v261
        %287 = vmatprep.subr.mxu0 0.0
        %288 = vmatpush1.msra.mxu0 %v262
        %289 = vmatprep.subr.mxu0 0.0
        %290 = vmatpush1.msra.mxu0 %v263
        %291 = vmatprep.subr.mxu0 0.0
        %292 = vmatpush1.msra.mxu0 %v264
        %293 = vmatprep.subr.mxu0 0.0
        %294 = vmatpush1.msra.mxu0 %v265
        %295 = vmatprep.subr.mxu0 0.0
        %296 = vmatpush1.msra.mxu0 %v266
        %297 = vmatprep.subr.mxu0 0.0
        %298 = vmatpush1.msra.mxu0 %v267
        %299 = vmatprep.subr.mxu0 0.0
        %300 = vmatpush1.msra.mxu0 0.0
        %301 = vmatprep.subr.mxu0 0.0
        %302 = vmatpush1.msra.mxu0 0.0
        %303 = vmatprep.subr.mxu0 0.0
        %304 = vmatpush1.msra.mxu0 0.0
        %305 = vmatprep.subr.mxu0 0.0
        %306 = vmatpush1.msra.mxu0 0.0
        %307 = vmatprep.subr.mxu0 0.0
        %308 = vmatpush1.msra.mxu0 0.0
        %309 = vmatprep.subr.mxu0 0.0
        %310 = vmatpush1.msra.mxu0 0.0
        %311 = vmatprep.subr.mxu0 0.0
        %312 = vmatpush1.msra.mxu0 0.0
        %313 = vmatprep.subr.mxu0 0.0
        %314 = vmatpush1.msra.mxu0 0.0
        %315 = vmatprep.subr.mxu0 0.0
        %316 = vmatpush1.msra.mxu0 0.0
        %317 = vmatprep.subr.mxu0 0.0
        %318 = vmatpush1.msra.mxu0 0.0
        %319 = vmatprep.subr.mxu0 0.0
        %320 = vmatpush1.msra.mxu0 0.0
        %321 = vmatprep.subr.mxu0 0.0
        %322 = vmatpush1.msra.mxu0 0.0
        %323 = vmatprep.subr.mxu0 0.0
        %324 = vmatpush1.msra.mxu0 0.0
        %325 = vmatprep.subr.mxu0 0.0
        %326 = vmatpush1.msra.mxu0 0.0
        %327 = vmatprep.subr.mxu0 0.0
        %328 = vmatpush1.msra.mxu0 0.0
        %329 = vmatprep.subr.mxu0 0.0
        %330 = vmatpush1.msra.mxu0 0.0
        %331 = vmatprep.subr.mxu0 0.0
        %332 = vmatpush1.msra.mxu0 0.0
        %333 = vmatprep.subr.mxu0 0.0
        %334 = vmatpush1.msra.mxu0 0.0
        %335 = vmatprep.subr.mxu0 0.0
        %336 = vmatpush1.msra.mxu0 0.0
        %337 = vmatprep.subr.mxu0 0.0
        %338 = vmatpush1.msra.mxu0 0.0
        %339 = vmatprep.subr.mxu0 0.0
        %340 = vmatpush1.msra.mxu0 0.0
        %341 = vmatprep.subr.mxu0 0.0
        %342 = vmatpush1.msra.mxu0 0.0
        %343 = vmatprep.mubr.f32.mxu0 0.0
        %344 = vmatmul.mubr.f32.gmra.mrb[0].mxu0 %v277
        %v345 = vpop.f32.mrb[0].mxu0
        %v346 = vadd.f32 %v273, %v345
        %v347 = vpop.f32.mrb[0].mxu0
        %348 = vdwg.mxu0
        %v349 = vmax.f32 %v346, 0.0
        %350 = vst.msk [vmem:[%s253] sm:$0xff] %vm275, %v349
        %s351 = sand.u32 %s125, 1
        %s352 = scalar_lea.sflag [#allocation4], %s351
        %s353 = sand.u32 %s125, 1
        %s354 = smul.addr %s353, 8
        %s355 = scalar_lea.vmem [#allocation7], %s354
        // Predicated region
        $region41: #{tpu_custom_call.1} parent=31 // pred_check
          %p356 = pneg %p135
        $region42: #{tpu_custom_call.1} parent=31 // pred_check_branch
          %358 = sbr.rel (%p356) target = $region44
        $region43: #{tpu_custom_call.1} parent=31 // pred_region
          %s360 = ssub.s32 128, 128
          %361 = vsyncadd %s352, %s360
          %s362 = sadd.s32 %s28, %s27
          %s363 = smul.addr %s362, 128
          %s364 = scalar_lea.hbm %s3, %s363
          %s366 = sshll.u32 %s355, 4
          %s367 = int_to_ptr.vmem [resolvable:$true] %s366
          %369 = dma.vmem_to_hbm [thread:$0]  %s367, 128, %s364, %s352
        $region44: #{tpu_custom_call.1} parent=31 // pred_fallthru
          _
      $region32: #{tpu_custom_call.1} parent=5 // pred_fallthru
        _
      %p370 = scmp.le.s32.totalorder 2, %s18
      // Predicated region
      $region45: #{tpu_custom_call.1} parent=5 // pred_check
        %p371 = pneg %p370
      $region46: #{tpu_custom_call.1} parent=5 // pred_check_branch
        %373 = sbr.rel (%p371) target = $region48
      $region47: #{tpu_custom_call.1} parent=5 // pred_region
        %s374 = ssub.s32 %s18, 2
        // Predicated region
        $region49: #{tpu_custom_call.1} parent=47 // pred_check
          %p375 = pneg %p141
        $region50: #{tpu_custom_call.1} parent=47 // pred_check_branch
          %377 = sbr.rel (%p375) target = $region52
        $region51: #{tpu_custom_call.1} parent=47 // pred_region
          %s378 = sand.u32 %s126, 1
          %s379 = scalar_lea.sflag [#allocation4], %s378
          %s380 = sand.u32 %s126, 1
          %s381 = smul.addr %s380, 8
          %s382 = scalar_lea.vmem [#allocation7], %s381
          %383 = dma.done %s379, 128
        $region52: #{tpu_custom_call.1} parent=47 // pred_fallthru
          _
      $region48: #{tpu_custom_call.1} parent=5 // pred_fallthru
        _
    $region6: #{tpu_custom_call.1} parent=1 // loop_footer
      %s22 = sadd.s32 1, %s18
    $region7: #{tpu_custom_call.1} parent=1 // loop_footer_branch
      %17 = sbr.rel target = $region3
    $region8: #{tpu_custom_call.1} parent=1 // loop_exit
      _
    %384 = vsyncpa [#allocation3], 1
    %s385 = scalar_lea.sflag [#allocation3], 1
    %386 = vsyncpa %s385, 1
    %387 = vsyncpa [#allocation6], 1
    %s388 = scalar_lea.sflag [#allocation6], 1
    %389 = vsyncpa %s388, 1
    %390 = vsyncpa [#allocation4], 1
    %s391 = scalar_lea.sflag [#allocation4], 1
    %392 = vsyncpa %s391, 1

</llo_original>
